<compile_context>
chip_gen: v7x
topology: tpu7x:2x2x1
jax: 0.10.0
libtpu: 0.0.40
codegen_flags: <defaults>
</compile_context>

<pallas_src>
import numpy as np
import jax
import jax.numpy as jnp
from jax.experimental import pallas as pl
from jax.experimental.pallas import tpu as pltpu


# ----------------------------------------------------------------------------
# helpers
# ----------------------------------------------------------------------------
def _pick_tile(n, max_tile):
    """Largest tile <= max_tile that divides n and is a multiple of 8
    (falls back to the full extent for small / awkward n)."""
    if n <= max_tile:
        return n
    t = max_tile - (max_tile % 8)
    while t >= 8:
        if n % t == 0:
            return t
        t -= 8
    return n


def prepare_params(params, *, n_head, d_k, d_v, d_model, use_bf16=False):
    """One-time weight re-layout, hoisted out of the forward hot path.

    - packs all heads into single (d_model, n_head*d) projection matrices
    - folds the 1/temperature attention scale into the Q projection
    - optionally casts matmul weights to bf16 (MXU-native on v5e/v6e/v7x)
    """
    w_dtype = jnp.bfloat16 if use_bf16 else jnp.float32
    temperature = float(np.power(d_k, 0.5))
    inv_t = 1.0 / temperature
    return {
        # (d_model, n_head*d_k) ; head h lives in columns [h*d_k:(h+1)*d_k]
        "wq": (params["w_qs"].T.astype(jnp.float32) * inv_t).astype(w_dtype),
        "wk": params["w_ks"].T.astype(w_dtype),
        "wv": params["w_vs"].T.astype(w_dtype),
        "fc_w": params["fc_w"].T.astype(w_dtype),           # (n_head*d_v, d_model)
        "fc_b": params["fc_b"].reshape(1, d_model).astype(jnp.float32),
        "ln_gamma": params["ln_gamma"].reshape(1, d_model).astype(jnp.float32),
        "ln_beta": params["ln_beta"].reshape(1, d_model).astype(jnp.float32),
    }


# ----------------------------------------------------------------------------
# Kernel 1: packed all-head projection + scaled dot-product attention
# ----------------------------------------------------------------------------
def _make_attn_kernel(n_head, d_k, d_v, compute_dtype):
    exact_recip = compute_dtype == jnp.float32

    def attn_kernel(q_ref, k_ref, v_ref, wq_ref, wk_ref, wv_ref, out_ref):
        # q_ref : (1, tq, d_model)      k_ref/v_ref : (1, Lk, d_model)
        # wq_ref/wk_ref : (d_model, n_head*d_k)   wv_ref : (d_model, n_head*d_v)
        # out_ref: (1, tq, n_head*d_v)  -- heads packed along the lane dim
        q = q_ref[0]
        k = k_ref[0]
        v = v_ref[0]

        # Packed projections: one lane-dense MXU matmul per Q/K/V for all heads.
        # (1/temperature is pre-folded into wq by prepare_params.)
        qh = jnp.dot(q, wq_ref[...], preferred_element_type=jnp.float32)
        kh = jnp.dot(k, wk_ref[...], preferred_element_type=jnp.float32)
        vh = jnp.dot(v, wv_ref[...], preferred_element_type=jnp.float32)

        outs = []
        for h in range(n_head):                      # static unroll, n_head tiny
            qh_h = qh[:, h * d_k:(h + 1) * d_k].astype(compute_dtype)
            kh_h = kh[:, h * d_k:(h + 1) * d_k].astype(compute_dtype)
            vh_h = vh[:, h * d_v:(h + 1) * d_v].astype(compute_dtype)

            # dot_general contracting the last dims -> no kh.T materialization
            scores = jax.lax.dot_general(
                qh_h, kh_h, (((1,), (1,)), ((), ())),
                preferred_element_type=jnp.float32)            # (tq, Lk) f32

            # softmax over keys (f32 statistics)
            m = jnp.max(scores, axis=-1, keepdims=True)
            e = jnp.exp(scores - m)
            denom = jnp.sum(e, axis=-1, keepdims=True)
            attn = e * pl.reciprocal(denom, approx=not exact_recip)

            outs.append(jnp.dot(attn.astype(compute_dtype), vh_h,
                                preferred_element_type=jnp.float32))

        # single lane-dense store of the packed-head output slab
        out_ref[0] = jnp.concatenate(outs, axis=-1).astype(out_ref.dtype)

    return attn_kernel


# ----------------------------------------------------------------------------
# Kernel 2: fc projection + residual + LayerNorm over flattened rows
# ----------------------------------------------------------------------------
def _make_fc_ln_kernel(compute_dtype):
    def fc_ln_kernel(x_ref, res_ref, fcw_ref, fcb_ref, gamma_ref, beta_ref,
                     out_ref, resout_ref):
        # x_ref   : (tr, n_head*d_v)        res_ref : (tr, d_model)
        # fcw_ref : (n_head*d_v, d_model)   fcb/gamma/beta : (1, d_model)
        x = x_ref[...].astype(compute_dtype)
        w = fcw_ref[...].astype(compute_dtype)

        fc = jnp.dot(x, w, preferred_element_type=jnp.float32) + fcb_ref[...]
        resout_ref[...] = fc

        # dropout (eval) == identity, then LayerNorm(fc + residual), stats in f32
        y = fc + res_ref[...]
        mean = jnp.mean(y, axis=-1, keepdims=True)
        var = jnp.mean((y - mean) ** 2, axis=-1, keepdims=True)
        y_norm = (y - mean) * jax.lax.rsqrt(var + 1e-5)
        out_ref[...] = y_norm * gamma_ref[...] + beta_ref[...]

    return fc_ln_kernel


# ----------------------------------------------------------------------------
# Wrapper
# ----------------------------------------------------------------------------
def multi_head_attention(q, k, v, packed, *, n_head, d_k, d_v,
                         use_bf16=False, q_tile=256, row_tile=512):
    """q, k, v: (B, L, d_model) float32. `packed` from prepare_params().
    Returns (output, resout) in float32."""
    B, Lq, d_model = q.shape
    _, Lk, _ = k.shape
    _, Lv, _ = v.shape
    compute_dtype = jnp.bfloat16 if use_bf16 else jnp.float32

    residual = q                              # f32 residual for LayerNorm
    q_in = q.astype(compute_dtype)
    k_in = k.astype(compute_dtype)
    v_in = v.astype(compute_dtype)

    tq = _pick_tile(Lq, q_tile)               # extra parallel grid axis (megacore)
    nq = Lq // tq

    # --- Kernel 1: attention, all heads per grid step --------------------------
    # NOTE: at realistic shapes on v7x (64 MiB VMEM), halve q_tile and set
    # pltpu.CompilerParams(vmem_limit_bytes=...) explicitly.
    attn_out = pl.pallas_call(
        _make_attn_kernel(n_head, d_k, d_v, compute_dtype),
        out_shape=jax.ShapeDtypeStruct((B, Lq, n_head * d_v), compute_dtype),
        grid=(B, nq),
        in_specs=[
            pl.BlockSpec((1, tq, d_model), lambda b, i: (b, i, 0)),
            pl.BlockSpec((1, Lk, d_model), lambda b, i: (b, 0, 0)),   # resident over i
            pl.BlockSpec((1, Lv, d_model), lambda b, i: (b, 0, 0)),   # resident over i
            pl.BlockSpec((d_model, n_head * d_k), lambda b, i: (0, 0)),
            pl.BlockSpec((d_model, n_head * d_k), lambda b, i: (0, 0)),
            pl.BlockSpec((d_model, n_head * d_v), lambda b, i: (0, 0)),
        ],
        out_specs=pl.BlockSpec((1, tq, n_head * d_v), lambda b, i: (b, i, 0)),
        compiler_params=pltpu.CompilerParams(
            dimension_semantics=("parallel", "parallel")),
    )(q_in, k_in, v_in, packed["wq"], packed["wk"], packed["wv"])

    # Output is already in the (B, Lq, n_head*d_v) concat layout:
    # the reshape below is a free contiguous view (no XLA transpose).
    rows = B * Lq
    x2d = attn_out.reshape(rows, n_head * d_v)
    res2d = residual.reshape(rows, d_model)

    tr = _pick_tile(rows, row_tile)
    nr = rows // tr

    # --- Kernel 2: fc + residual + LayerNorm over row tiles ---------------------
    output2d, resout2d = pl.pallas_call(
        _make_fc_ln_kernel(compute_dtype),
        out_shape=(jax.ShapeDtypeStruct((rows, d_model), jnp.float32),
                   jax.ShapeDtypeStruct((rows, d_model), jnp.float32)),
        grid=(nr,),
        in_specs=[
            pl.BlockSpec((tr, n_head * d_v), lambda r: (r, 0)),
            pl.BlockSpec((tr, d_model), lambda r: (r, 0)),
            pl.BlockSpec((n_head * d_v, d_model), lambda r: (0, 0)),  # weight resident
            pl.BlockSpec((1, d_model), lambda r: (0, 0)),
            pl.BlockSpec((1, d_model), lambda r: (0, 0)),
            pl.BlockSpec((1, d_model), lambda r: (0, 0)),
        ],
        out_specs=(pl.BlockSpec((tr, d_model), lambda r: (r, 0)),
                   pl.BlockSpec((tr, d_model), lambda r: (r, 0))),
        compiler_params=pltpu.CompilerParams(
            dimension_semantics=("parallel",)),
    )(x2d, res2d, packed["fc_w"], packed["fc_b"],
      packed["ln_gamma"], packed["ln_beta"])

    return (output2d.reshape(B, Lq, d_model),
            resout2d.reshape(B, Lq, d_model))


# ----------------------------------------------------------------------------
# Pure-JAX reference (mirrors the PyTorch forward in eval mode)
# ----------------------------------------------------------------------------
def reference(q, k, v, params, *, n_head, d_k, d_v):
    B, Lq, d_model = q.shape
    _, Lk, _ = k.shape
    temperature = np.power(d_k, 0.5)
    residual = q
    qp = (q @ params["w_qs"].T).reshape(B, Lq, n_head, d_k)
    kp = (k @ params["w_ks"].T).reshape(B, Lk, n_head, d_k)
    vp = (v @ params["w_vs"].T).reshape(B, Lk, n_head, d_v)
    qp = jnp.transpose(qp, (2, 0, 1, 3)).reshape(-1, Lq, d_k)
    kp = jnp.transpose(kp, (2, 0, 1, 3)).reshape(-1, Lk, d_k)
    vp = jnp.transpose(vp, (2, 0, 1, 3)).reshape(-1, Lk, d_v)
    attn = jnp.einsum("bqd,bkd->bqk", qp, kp) / temperature
    attn = jax.nn.softmax(attn, axis=2)
    out = jnp.einsum("bqk,bkd->bqd", attn, vp)
    out = out.reshape(n_head, B, Lq, d_v).transpose(1, 2, 0, 3).reshape(B, Lq, -1)
    resout = out @ params["fc_w"].T + params["fc_b"]
    y = resout + residual
    mean = jnp.mean(y, axis=-1, keepdims=True)
    var = jnp.mean((y - mean) ** 2, axis=-1, keepdims=True)
    y = (y - mean) / jnp.sqrt(var + 1e-5)
    y = y * params["ln_gamma"] + params["ln_beta"]
    return y, resout


if __name__ == "__main__":
    # Small, module-consistent shapes
    B, L, d_model = 2, 8, 32
    n_head, d_k, d_v = 2, 16, 16

    key = jax.random.PRNGKey(0)
    keys = jax.random.split(key, 8)

    std_qk = np.sqrt(2.0 / (d_model + d_k))
    std_v = np.sqrt(2.0 / (d_model + d_v))
    xavier_std = np.sqrt(2.0 / (n_head * d_v + d_model))

    params = {
        "w_qs": (jax.random.normal(keys[0], (n_head * d_k, d_model)) * std_qk).astype(jnp.float32),
        "w_ks": (jax.random.normal(keys[1], (n_head * d_k, d_model)) * std_qk).astype(jnp.float32),
        "w_vs": (jax.random.normal(keys[2], (n_head * d_v, d_model)) * std_v).astype(jnp.float32),
        "fc_w": (jax.random.normal(keys[3], (d_model, n_head * d_v)) * xavier_std).astype(jnp.float32),
        "fc_b": (jax.random.uniform(keys[4], (d_model,), minval=-0.1, maxval=0.1)).astype(jnp.float32),
        "ln_gamma": jnp.ones((d_model,), jnp.float32),
        "ln_beta": jnp.zeros((d_model,), jnp.float32),
    }

    q = jax.random.normal(keys[5], (B, L, d_model), dtype=jnp.float32)
    k = jax.random.normal(keys[6], (B, L, d_model), dtype=jnp.float32)
    v = jax.random.normal(keys[7], (B, L, d_model), dtype=jnp.float32)

    ref_out, ref_resout = reference(q, k, v, params, n_head=n_head, d_k=d_k, d_v=d_v)

    # ---- f32 path (exact): tight tolerance -------------------------------------
    packed_f32 = prepare_params(params, n_head=n_head, d_k=d_k, d_v=d_v,
                                d_model=d_model, use_bf16=False)
    output, resout = multi_head_attention(q, k, v, packed_f32,
                                          n_head=n_head, d_k=d_k, d_v=d_v,
                                          use_bf16=False)
    jax.block_until_ready((output, resout))
    np.testing.assert_allclose(np.asarray(output), np.asarray(ref_out),
                               rtol=1e-4, atol=1e-4)
    np.testing.assert_allclose(np.asarray(resout), np.asarray(ref_resout),
                               rtol=1e-4, atol=1e-4)

    # ---- bf16 MXU path (perf path on v5e/v6e/v7x): loose tolerance --------------
    packed_bf16 = prepare_params(params, n_head=n_head, d_k=d_k, d_v=d_v,
                                 d_model=d_model, use_bf16=True)
    output_bf, resout_bf = multi_head_attention(q, k, v, packed_bf16,
                                                n_head=n_head, d_k=d_k, d_v=d_v,
                                                use_bf16=True)
    jax.block_until_ready((output_bf, resout_bf))
    np.testing.assert_allclose(np.asarray(output_bf), np.asarray(ref_out),
                               rtol=5e-2, atol=5e-2)
    np.testing.assert_allclose(np.asarray(resout_bf), np.asarray(ref_resout),
                               rtol=5e-2, atol=5e-2)

    print("KERNEL_OK")
</pallas_src>

<mosaic_0001>
module attributes {stable_mosaic.version = 11 : i64} {
  func.func @attn_kernel(%arg0: i32, %arg1: i32, %arg2: memref<1x8x32xf32, #tpu.memory_space<vmem>>, %arg3: memref<1x8x32xf32, #tpu.memory_space<vmem>>, %arg4: memref<1x8x32xf32, #tpu.memory_space<vmem>>, %arg5: memref<32x32xf32, #tpu.memory_space<vmem>>, %arg6: memref<32x32xf32, #tpu.memory_space<vmem>>, %arg7: memref<32x32xf32, #tpu.memory_space<vmem>>, %arg8: memref<1x8x32xf32, #tpu.memory_space<vmem>>) attributes {dimension_semantics = [#tpu.dimension_semantics<parallel>, #tpu.dimension_semantics<parallel>], iteration_bounds = array<i64: 2, 1>, scalar_prefetch = 0 : i64, scratch_operands = 0 : i64, tpu.core_type = #tpu.core_type<tc>, window_params = [{transform_indices = @transform_0, window_bounds = array<i64: 1, 8, 32>}, {transform_indices = @transform_1, window_bounds = array<i64: 1, 8, 32>}, {transform_indices = @transform_2, window_bounds = array<i64: 1, 8, 32>}, {pipeline_mode = #tpu.pipeline_mode<synchronous>, transform_indices = @transform_3, window_bounds = array<i64: 32, 32>}, {pipeline_mode = #tpu.pipeline_mode<synchronous>, transform_indices = @transform_4, window_bounds = array<i64: 32, 32>}, {pipeline_mode = #tpu.pipeline_mode<synchronous>, transform_indices = @transform_5, window_bounds = array<i64: 32, 32>}, {transform_indices = @transform_6, window_bounds = array<i64: 1, 8, 32>}]} {
    %c0 = arith.constant 0 : index
    %c0_0 = arith.constant 0 : index
    %c0_1 = arith.constant 0 : index
    %0 = vector.load %arg2[%c0, %c0_0, %c0_1] : memref<1x8x32xf32, #tpu.memory_space<vmem>>, vector<1x8x32xf32>
    %1 = vector.shape_cast %0 : vector<1x8x32xf32> to vector<8x32xf32>
    %c0_2 = arith.constant 0 : index
    %c0_3 = arith.constant 0 : index
    %c0_4 = arith.constant 0 : index
    %2 = vector.load %arg3[%c0_2, %c0_3, %c0_4] : memref<1x8x32xf32, #tpu.memory_space<vmem>>, vector<1x8x32xf32>
    %3 = vector.shape_cast %2 : vector<1x8x32xf32> to vector<8x32xf32>
    %c0_5 = arith.constant 0 : index
    %c0_6 = arith.constant 0 : index
    %c0_7 = arith.constant 0 : index
    %4 = vector.load %arg4[%c0_5, %c0_6, %c0_7] : memref<1x8x32xf32, #tpu.memory_space<vmem>>, vector<1x8x32xf32>
    %5 = vector.shape_cast %4 : vector<1x8x32xf32> to vector<8x32xf32>
    %c0_8 = arith.constant 0 : index
    %c0_9 = arith.constant 0 : index
    %6 = vector.load %arg5[%c0_8, %c0_9] : memref<32x32xf32, #tpu.memory_space<vmem>>, vector<32x32xf32>
    %cst = arith.constant dense<0.000000e+00> : vector<8x32xf32>
    %7 = tpu.matmul %1, %6, %cst {dimension_numbers = #tpu.dot_dimension_numbers<[1], [0], [0], [1], [0, 0, 1, 1], [], []>} : vector<8x32xf32>, vector<32x32xf32>, vector<8x32xf32> -> vector<8x32xf32>
    %c0_10 = arith.constant 0 : index
    %c0_11 = arith.constant 0 : index
    %8 = vector.load %arg6[%c0_10, %c0_11] : memref<32x32xf32, #tpu.memory_space<vmem>>, vector<32x32xf32>
    %cst_12 = arith.constant dense<0.000000e+00> : vector<8x32xf32>
    %9 = tpu.matmul %3, %8, %cst_12 {dimension_numbers = #tpu.dot_dimension_numbers<[1], [0], [0], [1], [0, 0, 1, 1], [], []>} : vector<8x32xf32>, vector<32x32xf32>, vector<8x32xf32> -> vector<8x32xf32>
    %c0_13 = arith.constant 0 : index
    %c0_14 = arith.constant 0 : index
    %10 = vector.load %arg7[%c0_13, %c0_14] : memref<32x32xf32, #tpu.memory_space<vmem>>, vector<32x32xf32>
    %cst_15 = arith.constant dense<0.000000e+00> : vector<8x32xf32>
    %11 = tpu.matmul %5, %10, %cst_15 {dimension_numbers = #tpu.dot_dimension_numbers<[1], [0], [0], [1], [0, 0, 1, 1], [], []>} : vector<8x32xf32>, vector<32x32xf32>, vector<8x32xf32> -> vector<8x32xf32>
    %12 = vector.extract_strided_slice %7 {offsets = [0, 0], sizes = [8, 16], strides = [1, 1]} : vector<8x32xf32> to vector<8x16xf32>
    %13 = vector.extract_strided_slice %9 {offsets = [0, 0], sizes = [8, 16], strides = [1, 1]} : vector<8x32xf32> to vector<8x16xf32>
    %14 = vector.extract_strided_slice %11 {offsets = [0, 0], sizes = [8, 16], strides = [1, 1]} : vector<8x32xf32> to vector<8x16xf32>
    %cst_16 = arith.constant dense<0.000000e+00> : vector<8x8xf32>
    %15 = tpu.matmul %12, %13, %cst_16 {dimension_numbers = #tpu.dot_dimension_numbers<[1], [1], [0], [0], [0, 0, 1, 0], [], []>} : vector<8x16xf32>, vector<8x16xf32>, vector<8x8xf32> -> vector<8x8xf32>
    %cst_17 = arith.constant dense<0xFF800000> : vector<8xf32>
    %16 = vector.multi_reduction <maximumf>, %15, %cst_17 [1] : vector<8x8xf32> to vector<8xf32>
    %17 = vector.shape_cast %16 : vector<8xf32> to vector<8x1xf32>
    %18 = vector.broadcast %17 : vector<8x1xf32> to vector<8x8xf32>
    %19 = arith.subf %15, %18 : vector<8x8xf32>
    %20 = math.exp %19 : vector<8x8xf32>
    %cst_18 = arith.constant dense<0.000000e+00> : vector<8xf32>
    %21 = vector.multi_reduction <add>, %20, %cst_18 [1] : vector<8x8xf32> to vector<8xf32>
    %22 = vector.shape_cast %21 : vector<8xf32> to vector<8x1xf32>
    %23 = tpu.reciprocal %22 : vector<8x1xf32> -> vector<8x1xf32>
    %24 = vector.broadcast %23 : vector<8x1xf32> to vector<8x8xf32>
    %25 = arith.mulf %20, %24 : vector<8x8xf32>
    %cst_19 = arith.constant dense<0.000000e+00> : vector<8x16xf32>
    %26 = tpu.matmul %25, %14, %cst_19 {dimension_numbers = #tpu.dot_dimension_numbers<[1], [0], [0], [1], [0, 0, 1, 1], [], []>} : vector<8x8xf32>, vector<8x16xf32>, vector<8x16xf32> -> vector<8x16xf32>
    %27 = vector.extract_strided_slice %7 {offsets = [0, 16], sizes = [8, 16], strides = [1, 1]} : vector<8x32xf32> to vector<8x16xf32>
    %28 = vector.extract_strided_slice %9 {offsets = [0, 16], sizes = [8, 16], strides = [1, 1]} : vector<8x32xf32> to vector<8x16xf32>
    %29 = vector.extract_strided_slice %11 {offsets = [0, 16], sizes = [8, 16], strides = [1, 1]} : vector<8x32xf32> to vector<8x16xf32>
    %cst_20 = arith.constant dense<0.000000e+00> : vector<8x8xf32>
    %30 = tpu.matmul %27, %28, %cst_20 {dimension_numbers = #tpu.dot_dimension_numbers<[1], [1], [0], [0], [0, 0, 1, 0], [], []>} : vector<8x16xf32>, vector<8x16xf32>, vector<8x8xf32> -> vector<8x8xf32>
    %cst_21 = arith.constant dense<0xFF800000> : vector<8xf32>
    %31 = vector.multi_reduction <maximumf>, %30, %cst_21 [1] : vector<8x8xf32> to vector<8xf32>
    %32 = vector.shape_cast %31 : vector<8xf32> to vector<8x1xf32>
    %33 = vector.broadcast %32 : vector<8x1xf32> to vector<8x8xf32>
    %34 = arith.subf %30, %33 : vector<8x8xf32>
    %35 = math.exp %34 : vector<8x8xf32>
    %cst_22 = arith.constant dense<0.000000e+00> : vector<8xf32>
    %36 = vector.multi_reduction <add>, %35, %cst_22 [1] : vector<8x8xf32> to vector<8xf32>
    %37 = vector.shape_cast %36 : vector<8xf32> to vector<8x1xf32>
    %38 = tpu.reciprocal %37 : vector<8x1xf32> -> vector<8x1xf32>
    %39 = vector.broadcast %38 : vector<8x1xf32> to vector<8x8xf32>
    %40 = arith.mulf %35, %39 : vector<8x8xf32>
    %cst_23 = arith.constant dense<0.000000e+00> : vector<8x16xf32>
    %41 = tpu.matmul %40, %29, %cst_23 {dimension_numbers = #tpu.dot_dimension_numbers<[1], [0], [0], [1], [0, 0, 1, 1], [], []>} : vector<8x8xf32>, vector<8x16xf32>, vector<8x16xf32> -> vector<8x16xf32>
    %42 = tpu.concatenate %26, %41 in 1 : vector<8x16xf32>, vector<8x16xf32> -> vector<8x32xf32>
    %c0_24 = arith.constant 0 : index
    %c0_25 = arith.constant 0 : index
    %c0_26 = arith.constant 0 : index
    %43 = vector.load %arg8[%c0_24, %c0_25, %c0_26] : memref<1x8x32xf32, #tpu.memory_space<vmem>>, vector<1x8x32xf32>
    %44 = vector.shape_cast %43 : vector<1x8x32xf32> to vector<8x32xf32>
    %45 = vector.shape_cast %42 : vector<8x32xf32> to vector<1x8x32xf32>
    tpu.vector_store %arg8[%c0_24, %c0_25, %c0_26], %45 {strides = array<i32>} : memref<1x8x32xf32, #tpu.memory_space<vmem>>, vector<1x8x32xf32>,
    return
  }
  func.func @transform_0(%arg0: i32, %arg1: i32) -> (i32, i32, i32) {
    %c0_i32 = arith.constant 0 : i32
    %c0_i32_0 = arith.constant 0 : i32
    return %arg0, %arg1, %c0_i32 : i32, i32, i32
  }
  func.func @transform_1(%arg0: i32, %arg1: i32) -> (i32, i32, i32) {
    %c0_i32 = arith.constant 0 : i32
    %c0_i32_0 = arith.constant 0 : i32
    %c0_i32_1 = arith.constant 0 : i32
    return %arg0, %c0_i32, %c0_i32_0 : i32, i32, i32
  }
  func.func @transform_2(%arg0: i32, %arg1: i32) -> (i32, i32, i32) {
    %c0_i32 = arith.constant 0 : i32
    %c0_i32_0 = arith.constant 0 : i32
    %c0_i32_1 = arith.constant 0 : i32
    return %arg0, %c0_i32, %c0_i32_0 : i32, i32, i32
  }
  func.func @transform_3(%arg0: i32, %arg1: i32) -> (i32, i32) {
    %c0_i32 = arith.constant 0 : i32
    %c0_i32_0 = arith.constant 0 : i32
    %c0_i32_1 = arith.constant 0 : i32
    return %c0_i32, %c0_i32_0 : i32, i32
  }
  func.func @transform_4(%arg0: i32, %arg1: i32) -> (i32, i32) {
    %c0_i32 = arith.constant 0 : i32
    %c0_i32_0 = arith.constant 0 : i32
    %c0_i32_1 = arith.constant 0 : i32
    return %c0_i32, %c0_i32_0 : i32, i32
  }
  func.func @transform_5(%arg0: i32, %arg1: i32) -> (i32, i32) {
    %c0_i32 = arith.constant 0 : i32
    %c0_i32_0 = arith.constant 0 : i32
    %c0_i32_1 = arith.constant 0 : i32
    return %c0_i32, %c0_i32_0 : i32, i32
  }
  func.func @transform_6(%arg0: i32, %arg1: i32) -> (i32, i32, i32) {
    %c0_i32 = arith.constant 0 : i32
    %c0_i32_0 = arith.constant 0 : i32
    return %arg0, %arg1, %c0_i32 : i32, i32, i32
  }
}

</mosaic_0001>

<llo_original>
// kernel: tpu_custom_call.1
$region0: #{tpu_custom_call.1}
  #allocation0 [shape = 'u32[]', space=smem, size = 0x4, offset = 0x4, fixed_abs, tag = 'smem constant byte address 0x4 - core index']
  #allocation1 [shape = 'u32[144,128]{1,0:T(1,128)}', space=vmem, size = 0x12000, scoped, tag = 'internal scratch']
  %s0 = inlined_call_operand.hbm [shape: f32[2,8,32], index: 0, kind: input, shape index: {}]
  %s1 = inlined_call_operand.hbm [shape: f32[2,8,32], index: 1, kind: input, shape index: {}]
  %s2 = inlined_call_operand.hbm [shape: f32[2,8,32], index: 2, kind: input, shape index: {}]
  %s3 = inlined_call_operand.hbm [shape: f32[32,32], index: 3, kind: input, shape index: {}]
  %s4 = inlined_call_operand.hbm [shape: f32[32,32], index: 4, kind: input, shape index: {}]
  %s5 = inlined_call_operand.hbm [shape: f32[32,32], index: 5, kind: input, shape index: {}]
  %s6 = inlined_call_operand.hbm [shape: f32[2,8,32], index: 6, kind: output, shape index: {}]
  %s7 = sld [smem:[#allocation0]]
  $region81: #{tpu_custom_call.1} parent=0
    _
  %s9 = ssub.s32 1, %s7
  %s10 = scalar_select 0, %s9, %s7
  $region1: #{tpu_custom_call.1} parent=0
    #allocation2 [shape = 'u8[8192]{0}', space=vmem, size = 0x2000, scoped, tag = 'input window, operand 0']
    #allocation3 [shape = 's32[2]{0}', space=sflag, size = 0x8, scoped, tag = 'scoped memory for tpu_custom_call.1']
    #allocation4 [shape = 's32[2]{0}', space=sflag, size = 0x8, scoped, tag = 'scoped memory for tpu_custom_call.1']
    #allocation5 [shape = 'u8[8192]{0}', space=vmem, size = 0x2000, scoped, tag = 'input window, operand 1']
    #allocation6 [shape = 's32[2]{0}', space=sflag, size = 0x8, scoped, tag = 'scoped memory for tpu_custom_call.1']
    #allocation7 [shape = 'u8[8192]{0}', space=vmem, size = 0x2000, scoped, tag = 'input window, operand 2']
    #allocation8 [shape = 'u8[16384]{0}', space=vmem, size = 0x4000, scoped, tag = 'input window, operand 3, single buffered']
    #allocation9 [shape = 's32[1]{0}', space=sflag, size = 0x4, scoped, tag = 'scoped memory for tpu_custom_call.1']
    #allocation10 [shape = 'u8[16384]{0}', space=vmem, size = 0x4000, scoped, tag = 'input window, operand 4, single buffered']
    #allocation11 [shape = 'u8[16384]{0}', space=vmem, size = 0x4000, scoped, tag = 'input window, operand 5, single buffered']
    #allocation12 [shape = 's32[1]{0}', space=sflag, size = 0x4, scoped, tag = 'scoped memory for tpu_custom_call.1']
    #allocation13 [shape = 'u8[8192]{0}', space=vmem, size = 0x2000, scoped, tag = 'output window, operand 0']
    %11 = vsyncpa [#allocation3], 0
    %s12 = scalar_lea.sflag [#allocation3], 1
    %13 = vsyncpa %s12, 0
    %14 = vsyncpa [#allocation6], 0
    %s15 = scalar_lea.sflag [#allocation6], 1
    %16 = vsyncpa %s15, 0
    %17 = vsyncpa [#allocation9], 0
    %18 = vsyncpa [#allocation12], 0
    %19 = vsyncpa [#allocation4], 0
    %s20 = scalar_lea.sflag [#allocation4], 1
    %21 = vsyncpa %s20, 0
    loop: start=0, step=1, limit=4
    $region2: #{tpu_custom_call.1} parent=1 // loop_pre_header
      _
    $region3: #{tpu_custom_call.1} parent=1 // loop_header
      %s23 = sphi 0, %s27
      %p24 = scmp.ge.s32.totalorder %s23, 4
      %s30 = sphi 0, %s42
      %s31 = sphi 0, %s38
      %s32 = sphi 0, %s30
      %s33 = sphi 0, %s31
      %s34 = sphi 0, %s32
      %s35 = sphi 0, %s33
      %s47 = sphi 0, %s49
      %s50 = sphi 0, %s47
      %s51 = sphi 0, %s50
      %s67 = sphi 0, %s51
      %s73 = sphi 0, %s75
      %s76 = sphi 0, %s73
      %s77 = sphi 0, %s76
      %s93 = sphi 0, %s77
      %s99 = sphi 0, %s101
      %s102 = sphi 0, %s99
      %s103 = sphi 0, %s102
      %s119 = sphi 0, %s103
      %s123 = sphi 0, %s123
      %s125 = sphi 0, %s123
      %s126 = sphi 0, %s125
      %s140 = sphi 0, %s126
      %s144 = sphi 0, %s144
      %s146 = sphi 0, %s144
      %s147 = sphi 0, %s146
      %s161 = sphi 0, %s147
      %s165 = sphi 0, %s165
      %s167 = sphi 0, %s165
      %s168 = sphi 0, %s167
      %s182 = sphi 0, %s168
      %s190 = sphi 0, %s192
      %s193 = sphi 0, %s190
      %s194 = sphi 0, %s193
      %s210 = sphi 0, %s194
    $region4: #{tpu_custom_call.1} parent=1 // loop_header_branch
      %26 = sbr.rel (%p24) target = $region8
    $region5: #{tpu_custom_call.1} parent=1 // loop_body
      %s28 = ssub.s32 %s23, 1
      %s29 = ssub.s32 %s23, 2
      %s36 = sadd.s32 1, %s31
      %p37 = scmp.ge.s32.totalorder %s36, 1
      %s38 = scalar_select %p37, 0, %s36
      %s39 = sadd.s32 1, %s30
      %s40 = scalar_select %p37, %s39, %s30
      %p41 = scmp.ge.s32.totalorder %s40, 2
      %s42 = scalar_select %p41, 0, %s40
      %s43 = ssub.s32 %s30, %s42
      %s44 = ssub.s32 %s31, %s38
      %s45 = sor.u32 %s43, %s44
      %p46 = scmp.eq.s32.totalorder %s45, 0
      %s48 = sadd.s32 %s47, 1
      %s49 = scalar_select %p46, %s47, %s48
      %p52 = pneg %p46
      %p53 = scmp.eq.s32.totalorder %s23, 1
      %p54 = por %p52, %p53
      %p55 = scmp.ne.s32.totalorder %s47, %s50
      %p56 = scmp.eq.s32.totalorder %s23, 0
      %p57 = por %p55, %p56
      %p58 = scmp.ne.s32.totalorder %s47, %s50
      %p59 = scmp.eq.s32.totalorder %s28, 1
      %p60 = por %p58, %p59
      %p61 = scmp.ne.s32.totalorder %s50, %s51
      %p62 = scmp.eq.s32.totalorder %s28, 0
      %p63 = por %p61, %p62
      %p64 = scmp.ne.s32.totalorder %s50, %s51
      %p65 = scmp.eq.s32.totalorder %s29, 1
      %p66 = por %p64, %p65
      %p68 = scmp.ne.s32.totalorder %s51, %s67
      %p69 = scmp.eq.s32.totalorder %s29, 0
      %p70 = por %p68, %p69
      %s71 = ssub.s32 %s30, %s42
      %p72 = scmp.eq.s32.totalorder %s71, 0
      %s74 = sadd.s32 %s73, 1
      %s75 = scalar_select %p72, %s73, %s74
      %p78 = pneg %p72
      %p79 = scmp.eq.s32.totalorder %s23, 1
      %p80 = por %p78, %p79
      %p81 = scmp.ne.s32.totalorder %s73, %s76
      %p82 = scmp.eq.s32.totalorder %s23, 0
      %p83 = por %p81, %p82
      %p84 = scmp.ne.s32.totalorder %s73, %s76
      %p85 = scmp.eq.s32.totalorder %s28, 1
      %p86 = por %p84, %p85
      %p87 = scmp.ne.s32.totalorder %s76, %s77
      %p88 = scmp.eq.s32.totalorder %s28, 0
      %p89 = por %p87, %p88
      %p90 = scmp.ne.s32.totalorder %s76, %s77
      %p91 = scmp.eq.s32.totalorder %s29, 1
      %p92 = por %p90, %p91
      %p94 = scmp.ne.s32.totalorder %s77, %s93
      %p95 = scmp.eq.s32.totalorder %s29, 0
      %p96 = por %p94, %p95
      %s97 = ssub.s32 %s30, %s42
      %p98 = scmp.eq.s32.totalorder %s97, 0
      %s100 = sadd.s32 %s99, 1
      %s101 = scalar_select %p98, %s99, %s100
      %p104 = pneg %p98
      %p105 = scmp.eq.s32.totalorder %s23, 1
      %p106 = por %p104, %p105
      %p107 = scmp.ne.s32.totalorder %s99, %s102
      %p108 = scmp.eq.s32.totalorder %s23, 0
      %p109 = por %p107, %p108
      %p110 = scmp.ne.s32.totalorder %s99, %s102
      %p111 = scmp.eq.s32.totalorder %s28, 1
      %p112 = por %p110, %p111
      %p113 = scmp.ne.s32.totalorder %s102, %s103
      %p114 = scmp.eq.s32.totalorder %s28, 0
      %p115 = por %p113, %p114
      %p116 = scmp.ne.s32.totalorder %s102, %s103
      %p117 = scmp.eq.s32.totalorder %s29, 1
      %p118 = por %p116, %p117
      %p120 = scmp.ne.s32.totalorder %s103, %s119
      %p121 = scmp.eq.s32.totalorder %s29, 0
      %p122 = por %p120, %p121
      %s124 = sadd.s32 %s123, 1
      %p127 = scmp.eq.s32.totalorder %s23, 1
      %p128 = scmp.ne.s32.totalorder %s123, %s125
      %p129 = scmp.eq.s32.totalorder %s23, 0
      %p130 = por %p128, %p129
      %p131 = scmp.ne.s32.totalorder %s123, %s125
      %p132 = scmp.eq.s32.totalorder %s28, 1
      %p133 = por %p131, %p132
      %p134 = scmp.ne.s32.totalorder %s125, %s126
      %p135 = scmp.eq.s32.totalorder %s28, 0
      %p136 = por %p134, %p135
      %p137 = scmp.ne.s32.totalorder %s125, %s126
      %p138 = scmp.eq.s32.totalorder %s29, 1
      %p139 = por %p137, %p138
      %p141 = scmp.ne.s32.totalorder %s126, %s140
      %p142 = scmp.eq.s32.totalorder %s29, 0
      %p143 = por %p141, %p142
      %s145 = sadd.s32 %s144, 1
      %p148 = scmp.eq.s32.totalorder %s23, 1
      %p149 = scmp.ne.s32.totalorder %s144, %s146
      %p150 = scmp.eq.s32.totalorder %s23, 0
      %p151 = por %p149, %p150
      %p152 = scmp.ne.s32.totalorder %s144, %s146
      %p153 = scmp.eq.s32.totalorder %s28, 1
      %p154 = por %p152, %p153
      %p155 = scmp.ne.s32.totalorder %s146, %s147
      %p156 = scmp.eq.s32.totalorder %s28, 0
      %p157 = por %p155, %p156
      %p158 = scmp.ne.s32.totalorder %s146, %s147
      %p159 = scmp.eq.s32.totalorder %s29, 1
      %p160 = por %p158, %p159
      %p162 = scmp.ne.s32.totalorder %s147, %s161
      %p163 = scmp.eq.s32.totalorder %s29, 0
      %p164 = por %p162, %p163
      %s166 = sadd.s32 %s165, 1
      %p169 = scmp.eq.s32.totalorder %s23, 1
      %p170 = scmp.ne.s32.totalorder %s165, %s167
      %p171 = scmp.eq.s32.totalorder %s23, 0
      %p172 = por %p170, %p171
      %p173 = scmp.ne.s32.totalorder %s165, %s167
      %p174 = scmp.eq.s32.totalorder %s28, 1
      %p175 = por %p173, %p174
      %p176 = scmp.ne.s32.totalorder %s167, %s168
      %p177 = scmp.eq.s32.totalorder %s28, 0
      %p178 = por %p176, %p177
      %p179 = scmp.ne.s32.totalorder %s167, %s168
      %p180 = scmp.eq.s32.totalorder %s29, 1
      %p181 = por %p179, %p180
      %p183 = scmp.ne.s32.totalorder %s168, %s182
      %p184 = scmp.eq.s32.totalorder %s29, 0
      %p185 = por %p183, %p184
      %s186 = ssub.s32 %s30, %s42
      %s187 = ssub.s32 %s31, %s38
      %s188 = sor.u32 %s186, %s187
      %p189 = scmp.eq.s32.totalorder %s188, 0
      %s191 = sadd.s32 %s190, 1
      %s192 = scalar_select %p189, %s190, %s191
      %p195 = pneg %p189
      %p196 = scmp.eq.s32.totalorder %s23, 1
      %p197 = por %p195, %p196
      %p198 = scmp.ne.s32.totalorder %s190, %s193
      %p199 = scmp.eq.s32.totalorder %s23, 0
      %p200 = por %p198, %p199
      %p201 = scmp.ne.s32.totalorder %s190, %s193
      %p202 = scmp.eq.s32.totalorder %s28, 1
      %p203 = por %p201, %p202
      %p204 = scmp.ne.s32.totalorder %s193, %s194
      %p205 = scmp.eq.s32.totalorder %s28, 0
      %p206 = por %p204, %p205
      %p207 = scmp.ne.s32.totalorder %s193, %s194
      %p208 = scmp.eq.s32.totalorder %s29, 1
      %p209 = por %p207, %p208
      %p211 = scmp.ne.s32.totalorder %s194, %s210
      %p212 = scmp.eq.s32.totalorder %s29, 0
      %p213 = por %p211, %p212
      %p214 = scmp.le.s32.totalorder 1, %s23
      %p215 = scmp.lt.s32.totalorder %s23, 3
      %p216 = pnand %p214, %p215
      %p217 = pneg %p216
      // Predicated region
      $region9: #{tpu_custom_call.1} parent=5 // pred_check
        _
      $region10: #{tpu_custom_call.1} parent=5 // pred_check_branch
        %219 = sbr.rel (%p216) target = $region12
      $region11: #{tpu_custom_call.1} parent=5 // pred_region
        %s220 = ssub.s32 %s23, 1
        // Predicated region
        $region13: #{tpu_custom_call.1} parent=11 // pred_check
          %p221 = pneg %p136
        $region14: #{tpu_custom_call.1} parent=11 // pred_check_branch
          %223 = sbr.rel (%p221) target = $region16
        $region15: #{tpu_custom_call.1} parent=11 // pred_region
          %s225 = ssub.s32 512, 512
          %226 = vsyncadd [#allocation9], %s225
          %s227 = sshll.u32 [#allocation8], 4
          %s228 = int_to_ptr.vmem [resolvable:$true] %s227
          %233 = dma.hbm_to_vmem [thread:$0]  %s3, 512, %s228, [#allocation9], 128, 128, 8
        $region16: #{tpu_custom_call.1} parent=11 // pred_fallthru
          _
        // Predicated region
        $region17: #{tpu_custom_call.1} parent=11 // pred_check
          %p234 = pneg %p157
        $region18: #{tpu_custom_call.1} parent=11 // pred_check_branch
          %236 = sbr.rel (%p234) target = $region20
        $region19: #{tpu_custom_call.1} parent=11 // pred_region
          %s238 = ssub.s32 512, 512
          %239 = vsyncadd [#allocation9], %s238
          %s240 = sshll.u32 [#allocation10], 4
          %s241 = int_to_ptr.vmem [resolvable:$true] %s240
          %246 = dma.hbm_to_vmem [thread:$0]  %s4, 512, %s241, [#allocation9], 128, 128, 8
        $region20: #{tpu_custom_call.1} parent=11 // pred_fallthru
          _
        // Predicated region
        $region21: #{tpu_custom_call.1} parent=11 // pred_check
          %p247 = pneg %p178
        $region22: #{tpu_custom_call.1} parent=11 // pred_check_branch
          %249 = sbr.rel (%p247) target = $region24
        $region23: #{tpu_custom_call.1} parent=11 // pred_region
          %s251 = ssub.s32 512, 512
          %252 = vsyncadd [#allocation12], %s251
          %s253 = sshll.u32 [#allocation11], 4
          %s254 = int_to_ptr.vmem [resolvable:$true] %s253
          %259 = dma.hbm_to_vmem [thread:$0]  %s5, 512, %s254, [#allocation12], 128, 128, 8
        $region24: #{tpu_custom_call.1} parent=11 // pred_fallthru
          _
      $region12: #{tpu_custom_call.1} parent=5 // pred_fallthru
        _
      %p260 = scmp.lt.s32.totalorder %s23, 2
      // Predicated region
      $region25: #{tpu_custom_call.1} parent=5 // pred_check
        %p261 = pneg %p260
      $region26: #{tpu_custom_call.1} parent=5 // pred_check_branch
        %263 = sbr.rel (%p261) target = $region28
      $region27: #{tpu_custom_call.1} parent=5 // pred_region
        // Predicated region
        $region29: #{tpu_custom_call.1} parent=27 // pred_check
          %p264 = pneg %p57
        $region30: #{tpu_custom_call.1} parent=27 // pred_check_branch
          %266 = sbr.rel (%p264) target = $region32
        $region31: #{tpu_custom_call.1} parent=27 // pred_region
          %s267 = sand.u32 %s47, 1
          %s268 = scalar_lea.sflag [#allocation3], %s267
          %s269 = sand.u32 %s47, 1
          %s270 = smul.addr %s269, 8
          %s271 = scalar_lea.vmem [#allocation2], %s270
          %s273 = ssub.s32 128, 128
          %274 = vsyncadd %s268, %s273
          %s275 = sadd.s32 %s31, %s30
          %s276 = smul.addr %s275, 128
          %s277 = scalar_lea.hbm %s0, %s276
          %s279 = sshll.u32 %s271, 4
          %s280 = int_to_ptr.vmem [resolvable:$true] %s279
          %282 = dma.hbm_to_vmem [thread:$0]  %s277, 128, %s280, %s268
        $region32: #{tpu_custom_call.1} parent=27 // pred_fallthru
          _
        // Predicated region
        $region33: #{tpu_custom_call.1} parent=27 // pred_check
          %p283 = pneg %p83
        $region34: #{tpu_custom_call.1} parent=27 // pred_check_branch
          %285 = sbr.rel (%p283) target = $region36
        $region35: #{tpu_custom_call.1} parent=27 // pred_region
          %s286 = sand.u32 %s23, 1
          %s287 = scalar_lea.sflag [#allocation6], %s286
          %s288 = sand.u32 %s73, 1
          %s289 = smul.addr %s288, 8
          %s290 = scalar_lea.vmem [#allocation5], %s289
          %s292 = ssub.s32 128, 128
          %293 = vsyncadd %s287, %s292
          %s294 = smul.addr %s30, 128
          %s295 = scalar_lea.hbm %s1, %s294
          %s297 = sshll.u32 %s290, 4
          %s298 = int_to_ptr.vmem [resolvable:$true] %s297
          %300 = dma.hbm_to_vmem [thread:$0]  %s295, 128, %s298, %s287
        $region36: #{tpu_custom_call.1} parent=27 // pred_fallthru
          _
        // Predicated region
        $region37: #{tpu_custom_call.1} parent=27 // pred_check
          %p301 = pneg %p109
        $region38: #{tpu_custom_call.1} parent=27 // pred_check_branch
          %303 = sbr.rel (%p301) target = $region40
        $region39: #{tpu_custom_call.1} parent=27 // pred_region
          %s304 = sand.u32 %s23, 1
          %s305 = scalar_lea.sflag [#allocation6], %s304
          %s306 = sand.u32 %s99, 1
          %s307 = smul.addr %s306, 8
          %s308 = scalar_lea.vmem [#allocation7], %s307
          %s310 = ssub.s32 128, 128
          %311 = vsyncadd %s305, %s310
          %s312 = smul.addr %s30, 128
          %s313 = scalar_lea.hbm %s2, %s312
          %s315 = sshll.u32 %s308, 4
          %s316 = int_to_ptr.vmem [resolvable:$true] %s315
          %318 = dma.hbm_to_vmem [thread:$0]  %s313, 128, %s316, %s305
        $region40: #{tpu_custom_call.1} parent=27 // pred_fallthru
          _
      $region28: #{tpu_custom_call.1} parent=5 // pred_fallthru
        _
      %p319 = scmp.le.s32.totalorder 1, %s23
      %p320 = scmp.lt.s32.totalorder %s23, 3
      %p321 = pnand %p319, %p320
      %p322 = pneg %p321
      // Predicated region
      $region41: #{tpu_custom_call.1} parent=5 // pred_check
        _
      $region42: #{tpu_custom_call.1} parent=5 // pred_check_branch
        %324 = sbr.rel (%p321) target = $region44
      $region43: #{tpu_custom_call.1} parent=5 // pred_region
        %s325 = ssub.s32 %s23, 1
        %s326 = sand.u32 %s50, 1
        %s327 = scalar_lea.sflag [#allocation3], %s326
        %s328 = sand.u32 %s50, 1
        %s329 = smul.addr %s328, 8
        %s330 = scalar_lea.vmem [#allocation2], %s329
        // Predicated region
        $region45: #{tpu_custom_call.1} parent=43 // pred_check
          %p331 = pneg %p63
        $region46: #{tpu_custom_call.1} parent=43 // pred_check_branch
          %333 = sbr.rel (%p331) target = $region48
        $region47: #{tpu_custom_call.1} parent=43 // pred_region
          %334 = dma.done %s327, 128
        $region48: #{tpu_custom_call.1} parent=43 // pred_fallthru
          _
        %s335 = sand.u32 %s28, 1
        %s336 = scalar_lea.sflag [#allocation6], %s335
        %s337 = sand.u32 %s76, 1
        %s338 = smul.addr %s337, 8
        %s339 = scalar_lea.vmem [#allocation5], %s338
        // Predicated region
        $region49: #{tpu_custom_call.1} parent=43 // pred_check
          %p340 = pneg %p89
        $region50: #{tpu_custom_call.1} parent=43 // pred_check_branch
          %342 = sbr.rel (%p340) target = $region52
        $region51: #{tpu_custom_call.1} parent=43 // pred_region
          %343 = dma.done %s336, 128
        $region52: #{tpu_custom_call.1} parent=43 // pred_fallthru
          _
        %s344 = sand.u32 %s28, 1
        %s345 = scalar_lea.sflag [#allocation6], %s344
        %s346 = sand.u32 %s102, 1
        %s347 = smul.addr %s346, 8
        %s348 = scalar_lea.vmem [#allocation7], %s347
        // Predicated region
        $region53: #{tpu_custom_call.1} parent=43 // pred_check
          %p349 = pneg %p115
        $region54: #{tpu_custom_call.1} parent=43 // pred_check_branch
          %351 = sbr.rel (%p349) target = $region56
        $region55: #{tpu_custom_call.1} parent=43 // pred_region
          %352 = dma.done %s345, 128
        $region56: #{tpu_custom_call.1} parent=43 // pred_fallthru
          _
        // Predicated region
        $region57: #{tpu_custom_call.1} parent=43 // pred_check
          %p353 = pneg %p136
        $region58: #{tpu_custom_call.1} parent=43 // pred_check_branch
          %355 = sbr.rel (%p353) target = $region60
        $region59: #{tpu_custom_call.1} parent=43 // pred_region
          %356 = dma.done [#allocation9], 512
        $region60: #{tpu_custom_call.1} parent=43 // pred_fallthru
          _
        // Predicated region
        $region61: #{tpu_custom_call.1} parent=43 // pred_check
          %p357 = pneg %p157
        $region62: #{tpu_custom_call.1} parent=43 // pred_check_branch
          %359 = sbr.rel (%p357) target = $region64
        $region63: #{tpu_custom_call.1} parent=43 // pred_region
          %360 = dma.done [#allocation9], 512
        $region64: #{tpu_custom_call.1} parent=43 // pred_fallthru
          _
        // Predicated region
        $region65: #{tpu_custom_call.1} parent=43 // pred_check
          %p361 = pneg %p178
        $region66: #{tpu_custom_call.1} parent=43 // pred_check_branch
          %363 = sbr.rel (%p361) target = $region68
        $region67: #{tpu_custom_call.1} parent=43 // pred_region
          %364 = dma.done [#allocation12], 512
        $region68: #{tpu_custom_call.1} parent=43 // pred_fallthru
          _
        %s365 = sand.u32 %s50, 1
        %s366 = scalar_lea.sflag [#allocation3], %s365
        %s367 = sand.u32 %s50, 1
        %s368 = smul.addr %s367, 8
        %s369 = scalar_lea.vmem [#allocation2], %s368
        %p370 = pneg %p63
        %p371 = pneg %p60
        %s372 = sand.u32 %s28, 1
        %s373 = scalar_lea.sflag [#allocation6], %s372
        %s374 = sand.u32 %s76, 1
        %s375 = smul.addr %s374, 8
        %s376 = scalar_lea.vmem [#allocation5], %s375
        %p377 = pneg %p89
        %p378 = pneg %p86
        %s379 = sand.u32 %s28, 1
        %s380 = scalar_lea.sflag [#allocation6], %s379
        %s381 = sand.u32 %s102, 1
        %s382 = smul.addr %s381, 8
        %s383 = scalar_lea.vmem [#allocation7], %s382
        %p384 = pneg %p115
        %p385 = pneg %p112
        %p386 = pneg %p136
        %p387 = pneg %p133
        %p388 = pneg %p157
        %p389 = pneg %p154
        %p390 = pneg %p178
        %p391 = pneg %p175
        %p392 = pneg %p206
        %p393 = pneg %p203
        %s394 = sand.u32 %s193, 1
        %s395 = scalar_lea.sflag [#allocation4], %s394
        %s396 = sand.u32 %s193, 1
        %s397 = smul.addr %s396, 8
        %s398 = scalar_lea.vmem [#allocation13], %s397
        %v399 = vld [vmem:[%s330] sm:$0xff]
        %v400 = vld [vmem:[%s339] sm:$0xff]
        %v401 = vld [vmem:[%s348] sm:$0xff]
        %v402 = vld [vmem:[#allocation8] sm:$0xff]
        %v403 = vld [vmem:[#allocation8 + $0x8] sm:$0xff]
        %v404 = vld [vmem:[#allocation8 + $0x10] sm:$0xff]
        %v405 = vld [vmem:[#allocation8 + $0x18] sm:$0xff]
        %vm406 = vcmask 261120
        %v408 = vsel %vm406, %v399, 0
        %410 = vmatprep.subr.mxu0 0.0
        %411 = vmatpush1.msra.mxu0 %v402
        %412 = vmatprep.subr.mxu0 0.0
        %413 = vmatpush1.msra.mxu0 %v403
        %414 = vmatprep.subr.mxu0 0.0
        %415 = vmatpush1.msra.mxu0 %v404
        %416 = vmatprep.subr.mxu0 0.0
        %417 = vmatpush1.msra.mxu0 %v405
        %418 = vmatprep.subr.mxu0 0.0
        %419 = vmatpush1.msra.mxu0 0.0
        %420 = vmatprep.subr.mxu0 0.0
        %421 = vmatpush1.msra.mxu0 0.0
        %422 = vmatprep.subr.mxu0 0.0
        %423 = vmatpush1.msra.mxu0 0.0
        %424 = vmatprep.subr.mxu0 0.0
        %425 = vmatpush1.msra.mxu0 0.0
        %426 = vmatprep.subr.mxu0 0.0
        %427 = vmatpush1.msra.mxu0 0.0
        %428 = vmatprep.subr.mxu0 0.0
        %429 = vmatpush1.msra.mxu0 0.0
        %430 = vmatprep.subr.mxu0 0.0
        %431 = vmatpush1.msra.mxu0 0.0
        %432 = vmatprep.subr.mxu0 0.0
        %433 = vmatpush1.msra.mxu0 0.0
        %434 = vmatprep.subr.mxu0 0.0
        %435 = vmatpush1.msra.mxu0 0.0
        %436 = vmatprep.subr.mxu0 0.0
        %437 = vmatpush1.msra.mxu0 0.0
        %438 = vmatprep.subr.mxu0 0.0
        %439 = vmatpush1.msra.mxu0 0.0
        %440 = vmatprep.subr.mxu0 0.0
        %441 = vmatpush1.msra.mxu0 0.0
        %442 = vmatprep.subr.mxu0 0.0
        %443 = vmatpush1.msra.mxu0 0.0
        %444 = vmatprep.subr.mxu0 0.0
        %445 = vmatpush1.msra.mxu0 0.0
        %446 = vmatprep.subr.mxu0 0.0
        %447 = vmatpush1.msra.mxu0 0.0
        %448 = vmatprep.subr.mxu0 0.0
        %449 = vmatpush1.msra.mxu0 0.0
        %450 = vmatprep.subr.mxu0 0.0
        %451 = vmatpush1.msra.mxu0 0.0
        %452 = vmatprep.subr.mxu0 0.0
        %453 = vmatpush1.msra.mxu0 0.0
        %454 = vmatprep.subr.mxu0 0.0
        %455 = vmatpush1.msra.mxu0 0.0
        %456 = vmatprep.subr.mxu0 0.0
        %457 = vmatpush1.msra.mxu0 0.0
        %458 = vmatprep.subr.mxu0 0.0
        %459 = vmatpush1.msra.mxu0 0.0
        %460 = vmatprep.subr.mxu0 0.0
        %461 = vmatpush1.msra.mxu0 0.0
        %462 = vmatprep.subr.mxu0 0.0
        %463 = vmatpush1.msra.mxu0 0.0
        %464 = vmatprep.subr.mxu0 0.0
        %465 = vmatpush1.msra.mxu0 0.0
        %466 = vmatprep.subr.mxu0 0.0
        %467 = vmatpush1.msra.mxu0 0.0
        %468 = vmatprep.subr.mxu0 0.0
        %469 = vmatpush1.msra.mxu0 0.0
        %470 = vmatprep.subr.mxu0 0.0
        %471 = vmatpush1.msra.mxu0 0.0
        %472 = vmatprep.subr.mxu0 0.0
        %473 = vmatpush1.msra.mxu0 0.0
        %474 = vmatprep.mubr.f32.mxu0 0.0
        %475 = vmatmul.mubr.f32.gmra.mrb[0].mxu0 %v408
        %v476 = vpop.f32.mrb[0].mxu0
        %v477 = vadd.f32 0.0, %v476
        %v478 = vpop.f32.mrb[0].mxu0
        %479 = vdwg.mxu0
        %v480 = vld [vmem:[#allocation10] sm:$0xff]
        %v481 = vld [vmem:[#allocation10 + $0x8] sm:$0xff]
        %v482 = vld [vmem:[#allocation10 + $0x10] sm:$0xff]
        %v483 = vld [vmem:[#allocation10 + $0x18] sm:$0xff]
        %v485 = vsel %vm406, %v400, 0
        %487 = vmatprep.subr.mxu0 0.0
        %488 = vmatpush1.msra.mxu0 %v480
        %489 = vmatprep.subr.mxu0 0.0
        %490 = vmatpush1.msra.mxu0 %v481
        %491 = vmatprep.subr.mxu0 0.0
        %492 = vmatpush1.msra.mxu0 %v482
        %493 = vmatprep.subr.mxu0 0.0
        %494 = vmatpush1.msra.mxu0 %v483
        %495 = vmatprep.subr.mxu0 0.0
        %496 = vmatpush1.msra.mxu0 0.0
        %497 = vmatprep.subr.mxu0 0.0
        %498 = vmatpush1.msra.mxu0 0.0
        %499 = vmatprep.subr.mxu0 0.0
        %500 = vmatpush1.msra.mxu0 0.0
        %501 = vmatprep.subr.mxu0 0.0
        %502 = vmatpush1.msra.mxu0 0.0
        %503 = vmatprep.subr.mxu0 0.0
        %504 = vmatpush1.msra.mxu0 0.0
        %505 = vmatprep.subr.mxu0 0.0
        %506 = vmatpush1.msra.mxu0 0.0
        %507 = vmatprep.subr.mxu0 0.0
        %508 = vmatpush1.msra.mxu0 0.0
        %509 = vmatprep.subr.mxu0 0.0
        %510 = vmatpush1.msra.mxu0 0.0
        %511 = vmatprep.subr.mxu0 0.0
        %512 = vmatpush1.msra.mxu0 0.0
        %513 = vmatprep.subr.mxu0 0.0
        %514 = vmatpush1.msra.mxu0 0.0
        %515 = vmatprep.subr.mxu0 0.0
        %516 = vmatpush1.msra.mxu0 0.0
        %517 = vmatprep.subr.mxu0 0.0
        %518 = vmatpush1.msra.mxu0 0.0
        %519 = vmatprep.subr.mxu0 0.0
        %520 = vmatpush1.msra.mxu0 0.0
        %521 = vmatprep.subr.mxu0 0.0
        %522 = vmatpush1.msra.mxu0 0.0
        %523 = vmatprep.subr.mxu0 0.0
        %524 = vmatpush1.msra.mxu0 0.0
        %525 = vmatprep.subr.mxu0 0.0
        %526 = vmatpush1.msra.mxu0 0.0
        %527 = vmatprep.subr.mxu0 0.0
        %528 = vmatpush1.msra.mxu0 0.0
        %529 = vmatprep.subr.mxu0 0.0
        %530 = vmatpush1.msra.mxu0 0.0
        %531 = vmatprep.subr.mxu0 0.0
        %532 = vmatpush1.msra.mxu0 0.0
        %533 = vmatprep.subr.mxu0 0.0
        %534 = vmatpush1.msra.mxu0 0.0
        %535 = vmatprep.subr.mxu0 0.0
        %536 = vmatpush1.msra.mxu0 0.0
        %537 = vmatprep.subr.mxu0 0.0
        %538 = vmatpush1.msra.mxu0 0.0
        %539 = vmatprep.subr.mxu0 0.0
        %540 = vmatpush1.msra.mxu0 0.0
        %541 = vmatprep.subr.mxu0 0.0
        %542 = vmatpush1.msra.mxu0 0.0
        %543 = vmatprep.subr.mxu0 0.0
        %544 = vmatpush1.msra.mxu0 0.0
        %545 = vmatprep.subr.mxu0 0.0
        %546 = vmatpush1.msra.mxu0 0.0
        %547 = vmatprep.subr.mxu0 0.0
        %548 = vmatpush1.msra.mxu0 0.0
        %549 = vmatprep.subr.mxu0 0.0
        %550 = vmatpush1.msra.mxu0 0.0
        %551 = vmatprep.mubr.f32.mxu0 0.0
        %552 = vmatmul.mubr.f32.gmra.mrb[0].mxu0 %v485
        %v553 = vpop.f32.mrb[0].mxu0
        %v554 = vadd.f32 0.0, %v553
        %v555 = vpop.f32.mrb[0].mxu0
        %556 = vdwg.mxu0
        %v557 = vld [vmem:[#allocation11] sm:$0xff]
        %v558 = vld [vmem:[#allocation11 + $0x8] sm:$0xff]
        %v559 = vld [vmem:[#allocation11 + $0x10] sm:$0xff]
        %v560 = vld [vmem:[#allocation11 + $0x18] sm:$0xff]
        %v562 = vsel %vm406, %v401, 0
        %564 = vmatprep.subr.mxu0 0.0
        %565 = vmatpush1.msra.mxu0 %v557
        %566 = vmatprep.subr.mxu0 0.0
        %567 = vmatpush1.msra.mxu0 %v558
        %568 = vmatprep.subr.mxu0 0.0
        %569 = vmatpush1.msra.mxu0 %v559
        %570 = vmatprep.subr.mxu0 0.0
        %571 = vmatpush1.msra.mxu0 %v560
        %572 = vmatprep.subr.mxu0 0.0
        %573 = vmatpush1.msra.mxu0 0.0
        %574 = vmatprep.subr.mxu0 0.0
        %575 = vmatpush1.msra.mxu0 0.0
        %576 = vmatprep.subr.mxu0 0.0
        %577 = vmatpush1.msra.mxu0 0.0
        %578 = vmatprep.subr.mxu0 0.0
        %579 = vmatpush1.msra.mxu0 0.0
        %580 = vmatprep.subr.mxu0 0.0
        %581 = vmatpush1.msra.mxu0 0.0
        %582 = vmatprep.subr.mxu0 0.0
        %583 = vmatpush1.msra.mxu0 0.0
        %584 = vmatprep.subr.mxu0 0.0
        %585 = vmatpush1.msra.mxu0 0.0
        %586 = vmatprep.subr.mxu0 0.0
        %587 = vmatpush1.msra.mxu0 0.0
        %588 = vmatprep.subr.mxu0 0.0
        %589 = vmatpush1.msra.mxu0 0.0
        %590 = vmatprep.subr.mxu0 0.0
        %591 = vmatpush1.msra.mxu0 0.0
        %592 = vmatprep.subr.mxu0 0.0
        %593 = vmatpush1.msra.mxu0 0.0
        %594 = vmatprep.subr.mxu0 0.0
        %595 = vmatpush1.msra.mxu0 0.0
        %596 = vmatprep.subr.mxu0 0.0
        %597 = vmatpush1.msra.mxu0 0.0
        %598 = vmatprep.subr.mxu0 0.0
        %599 = vmatpush1.msra.mxu0 0.0
        %600 = vmatprep.subr.mxu0 0.0
        %601 = vmatpush1.msra.mxu0 0.0
        %602 = vmatprep.subr.mxu0 0.0
        %603 = vmatpush1.msra.mxu0 0.0
        %604 = vmatprep.subr.mxu0 0.0
        %605 = vmatpush1.msra.mxu0 0.0
        %606 = vmatprep.subr.mxu0 0.0
        %607 = vmatpush1.msra.mxu0 0.0
        %608 = vmatprep.subr.mxu0 0.0
        %609 = vmatpush1.msra.mxu0 0.0
        %610 = vmatprep.subr.mxu0 0.0
        %611 = vmatpush1.msra.mxu0 0.0
        %612 = vmatprep.subr.mxu0 0.0
        %613 = vmatpush1.msra.mxu0 0.0
        %614 = vmatprep.subr.mxu0 0.0
        %615 = vmatpush1.msra.mxu0 0.0
        %616 = vmatprep.subr.mxu0 0.0
        %617 = vmatpush1.msra.mxu0 0.0
        %618 = vmatprep.subr.mxu0 0.0
        %619 = vmatpush1.msra.mxu0 0.0
        %620 = vmatprep.subr.mxu0 0.0
        %621 = vmatpush1.msra.mxu0 0.0
        %622 = vmatprep.subr.mxu0 0.0
        %623 = vmatpush1.msra.mxu0 0.0
        %624 = vmatprep.subr.mxu0 0.0
        %625 = vmatpush1.msra.mxu0 0.0
        %626 = vmatprep.subr.mxu0 0.0
        %627 = vmatpush1.msra.mxu0 0.0
        %628 = vmatprep.mubr.f32.mxu0 0.0
        %629 = vmatmul.mubr.f32.gmra.mrb[0].mxu0 %v562
        %v630 = vpop.f32.mrb[0].mxu0
        %v631 = vadd.f32 0.0, %v630
        %v632 = vpop.f32.mrb[0].mxu0
        %633 = vdwg.mxu0
        %vm634 = vcmask 130048
        %v636 = vsel %vm634, %v477, 0
        %v639 = vsel %vm634, %v554, 0
        %641 = vmatprep.subr.mxu0 0.0
        %642 = vmatpush1.xpose.msra.mxu0 %v639
        %643 = vmatprep.subr.mxu0 0.0
        %644 = vmatpush1.xpose.msra.mxu0 0.0
        %645 = vmatprep.subr.mxu0 0.0
        %646 = vmatpush1.xpose.msra.mxu0 0.0
        %647 = vmatprep.subr.mxu0 0.0
        %648 = vmatpush1.xpose.msra.mxu0 0.0
        %649 = vmatprep.subr.mxu0 0.0
        %650 = vmatpush1.xpose.msra.mxu0 0.0
        %651 = vmatprep.subr.mxu0 0.0
        %652 = vmatpush1.xpose.msra.mxu0 0.0
        %653 = vmatprep.subr.mxu0 0.0
        %654 = vmatpush1.xpose.msra.mxu0 0.0
        %655 = vmatprep.subr.mxu0 0.0
        %656 = vmatpush1.xpose.msra.mxu0 0.0
        %657 = vmatprep.subr.mxu0 0.0
        %658 = vmatpush1.xpose.msra.mxu0 0.0
        %659 = vmatprep.subr.mxu0 0.0
        %660 = vmatpush1.xpose.msra.mxu0 0.0
        %661 = vmatprep.subr.mxu0 0.0
        %662 = vmatpush1.xpose.msra.mxu0 0.0
        %663 = vmatprep.subr.mxu0 0.0
        %664 = vmatpush1.xpose.msra.mxu0 0.0
        %665 = vmatprep.subr.mxu0 0.0
        %666 = vmatpush1.xpose.msra.mxu0 0.0
        %667 = vmatprep.subr.mxu0 0.0
        %668 = vmatpush1.xpose.msra.mxu0 0.0
        %669 = vmatprep.subr.mxu0 0.0
        %670 = vmatpush1.xpose.msra.mxu0 0.0
        %671 = vmatprep.subr.mxu0 0.0
        %672 = vmatpush1.xpose.msra.mxu0 0.0
        %673 = vmatprep.subr.mxu0 0.0
        %674 = vmatpush1.xpose.msra.mxu0 0.0
        %675 = vmatprep.subr.mxu0 0.0
        %676 = vmatpush1.xpose.msra.mxu0 0.0
        %677 = vmatprep.subr.mxu0 0.0
        %678 = vmatpush1.xpose.msra.mxu0 0.0
        %679 = vmatprep.subr.mxu0 0.0
        %680 = vmatpush1.xpose.msra.mxu0 0.0
        %681 = vmatprep.subr.mxu0 0.0
        %682 = vmatpush1.xpose.msra.mxu0 0.0
        %683 = vmatprep.subr.mxu0 0.0
        %684 = vmatpush1.xpose.msra.mxu0 0.0
        %685 = vmatprep.subr.mxu0 0.0
        %686 = vmatpush1.xpose.msra.mxu0 0.0
        %687 = vmatprep.subr.mxu0 0.0
        %688 = vmatpush1.xpose.msra.mxu0 0.0
        %689 = vmatprep.subr.mxu0 0.0
        %690 = vmatpush1.xpose.msra.mxu0 0.0
        %691 = vmatprep.subr.mxu0 0.0
        %692 = vmatpush1.xpose.msra.mxu0 0.0
        %693 = vmatprep.subr.mxu0 0.0
        %694 = vmatpush1.xpose.msra.mxu0 0.0
        %695 = vmatprep.subr.mxu0 0.0
        %696 = vmatpush1.xpose.msra.mxu0 0.0
        %697 = vmatprep.subr.mxu0 0.0
        %698 = vmatpush1.xpose.msra.mxu0 0.0
        %699 = vmatprep.subr.mxu0 0.0
        %700 = vmatpush1.xpose.msra.mxu0 0.0
        %701 = vmatprep.subr.mxu0 0.0
        %702 = vmatpush1.xpose.msra.mxu0 0.0
        %703 = vmatprep.subr.mxu0 0.0
        %704 = vmatpush1.xpose.msra.mxu0 0.0
        %705 = vmatprep.mubr.f32.mxu0 0.0
        %706 = vmatmul.mubr.f32.gmra.mrb[0].mxu0 %v636
        %v707 = vpop.f32.mrb[0].mxu0
        %v708 = vadd.f32 0.0, %v707
        %v709 = vpop.f32.mrb[0].mxu0
        %710 = vdwg.mxu0
        %vm711 = vcmask 64512
        %v712 = vsel %vm711, %v708, -inf
        %713 = vmax.xlane.f32.xlu0 %v712
        %v714 = vpop.xlane.xlu0 %713
        %v715 = vsub.f32 %v708, %v714
        %v716 = vmul.f32 %v715, 1.442695
        %v717 = vpow.pop %v716
        %v718 = vsel %vm711, %v717, 0.0
        %719 = vadd.xlane.f32.xlu0 %v718
        %v720 = vpop.xlane.xlu0 %719
        %v721 = vrcp.pop %v720
        %v722 = vmul.f32 %v717, %v721
        %v724 = vsel %vm711, %v722, 0
        %726 = vmatprep.subr.mxu0 0.0
        %727 = vmatpush1.msra.mxu0 %v631
        %728 = vmatprep.subr.mxu0 0.0
        %729 = vmatpush1.msra.mxu0 0.0
        %730 = vmatprep.subr.mxu0 0.0
        %731 = vmatpush1.msra.mxu0 0.0
        %732 = vmatprep.subr.mxu0 0.0
        %733 = vmatpush1.msra.mxu0 0.0
        %734 = vmatprep.subr.mxu0 0.0
        %735 = vmatpush1.msra.mxu0 0.0
        %736 = vmatprep.subr.mxu0 0.0
        %737 = vmatpush1.msra.mxu0 0.0
        %738 = vmatprep.subr.mxu0 0.0
        %739 = vmatpush1.msra.mxu0 0.0
        %740 = vmatprep.subr.mxu0 0.0
        %741 = vmatpush1.msra.mxu0 0.0
        %742 = vmatprep.subr.mxu0 0.0
        %743 = vmatpush1.msra.mxu0 0.0
        %744 = vmatprep.subr.mxu0 0.0
        %745 = vmatpush1.msra.mxu0 0.0
        %746 = vmatprep.subr.mxu0 0.0
        %747 = vmatpush1.msra.mxu0 0.0
        %748 = vmatprep.subr.mxu0 0.0
        %749 = vmatpush1.msra.mxu0 0.0
        %750 = vmatprep.subr.mxu0 0.0
        %751 = vmatpush1.msra.mxu0 0.0
        %752 = vmatprep.subr.mxu0 0.0
        %753 = vmatpush1.msra.mxu0 0.0
        %754 = vmatprep.subr.mxu0 0.0
        %755 = vmatpush1.msra.mxu0 0.0
        %756 = vmatprep.subr.mxu0 0.0
        %757 = vmatpush1.msra.mxu0 0.0
        %758 = vmatprep.subr.mxu0 0.0
        %759 = vmatpush1.msra.mxu0 0.0
        %760 = vmatprep.subr.mxu0 0.0
        %761 = vmatpush1.msra.mxu0 0.0
        %762 = vmatprep.subr.mxu0 0.0
        %763 = vmatpush1.msra.mxu0 0.0
        %764 = vmatprep.subr.mxu0 0.0
        %765 = vmatpush1.msra.mxu0 0.0
        %766 = vmatprep.subr.mxu0 0.0
        %767 = vmatpush1.msra.mxu0 0.0
        %768 = vmatprep.subr.mxu0 0.0
        %769 = vmatpush1.msra.mxu0 0.0
        %770 = vmatprep.subr.mxu0 0.0
        %771 = vmatpush1.msra.mxu0 0.0
        %772 = vmatprep.subr.mxu0 0.0
        %773 = vmatpush1.msra.mxu0 0.0
        %774 = vmatprep.subr.mxu0 0.0
        %775 = vmatpush1.msra.mxu0 0.0
        %776 = vmatprep.subr.mxu0 0.0
        %777 = vmatpush1.msra.mxu0 0.0
        %778 = vmatprep.subr.mxu0 0.0
        %779 = vmatpush1.msra.mxu0 0.0
        %780 = vmatprep.subr.mxu0 0.0
        %781 = vmatpush1.msra.mxu0 0.0
        %782 = vmatprep.subr.mxu0 0.0
        %783 = vmatpush1.msra.mxu0 0.0
        %784 = vmatprep.subr.mxu0 0.0
        %785 = vmatpush1.msra.mxu0 0.0
        %786 = vmatprep.subr.mxu0 0.0
        %787 = vmatpush1.msra.mxu0 0.0
        %788 = vmatprep.subr.mxu0 0.0
        %789 = vmatpush1.msra.mxu0 0.0
        %790 = vmatprep.mubr.f32.mxu0 0.0
        %791 = vmatmul.mubr.f32.gmra.mrb[0].mxu0 %v724
        %v792 = vpop.f32.mrb[0].mxu0
        %v793 = vadd.f32 0.0, %v792
        %v794 = vpop.f32.mrb[0].mxu0
        %795 = vdwg.mxu0
        %796 = vrot.lane.b32.xlu0 %v477, 112
        %v797 = vpop.permute.xlu0 %796
        %798 = vrot.lane.b32.xlu0 %v554, 112
        %v799 = vpop.permute.xlu0 %798
        %v800 = vsel %vm634, %v797, 0
        %v802 = vsel %vm634, %v799, 0
        %804 = vmatprep.subr.mxu0 0.0
        %805 = vmatpush1.xpose.msra.mxu0 %v802
        %806 = vmatprep.subr.mxu0 0.0
        %807 = vmatpush1.xpose.msra.mxu0 0.0
        %808 = vmatprep.subr.mxu0 0.0
        %809 = vmatpush1.xpose.msra.mxu0 0.0
        %810 = vmatprep.subr.mxu0 0.0
        %811 = vmatpush1.xpose.msra.mxu0 0.0
        %812 = vmatprep.subr.mxu0 0.0
        %813 = vmatpush1.xpose.msra.mxu0 0.0
        %814 = vmatprep.subr.mxu0 0.0
        %815 = vmatpush1.xpose.msra.mxu0 0.0
        %816 = vmatprep.subr.mxu0 0.0
        %817 = vmatpush1.xpose.msra.mxu0 0.0
        %818 = vmatprep.subr.mxu0 0.0
        %819 = vmatpush1.xpose.msra.mxu0 0.0
        %820 = vmatprep.subr.mxu0 0.0
        %821 = vmatpush1.xpose.msra.mxu0 0.0
        %822 = vmatprep.subr.mxu0 0.0
        %823 = vmatpush1.xpose.msra.mxu0 0.0
        %824 = vmatprep.subr.mxu0 0.0
        %825 = vmatpush1.xpose.msra.mxu0 0.0
        %826 = vmatprep.subr.mxu0 0.0
        %827 = vmatpush1.xpose.msra.mxu0 0.0
        %828 = vmatprep.subr.mxu0 0.0
        %829 = vmatpush1.xpose.msra.mxu0 0.0
        %830 = vmatprep.subr.mxu0 0.0
        %831 = vmatpush1.xpose.msra.mxu0 0.0
        %832 = vmatprep.subr.mxu0 0.0
        %833 = vmatpush1.xpose.msra.mxu0 0.0
        %834 = vmatprep.subr.mxu0 0.0
        %835 = vmatpush1.xpose.msra.mxu0 0.0
        %836 = vmatprep.subr.mxu0 0.0
        %837 = vmatpush1.xpose.msra.mxu0 0.0
        %838 = vmatprep.subr.mxu0 0.0
        %839 = vmatpush1.xpose.msra.mxu0 0.0
        %840 = vmatprep.subr.mxu0 0.0
        %841 = vmatpush1.xpose.msra.mxu0 0.0
        %842 = vmatprep.subr.mxu0 0.0
        %843 = vmatpush1.xpose.msra.mxu0 0.0
        %844 = vmatprep.subr.mxu0 0.0
        %845 = vmatpush1.xpose.msra.mxu0 0.0
        %846 = vmatprep.subr.mxu0 0.0
        %847 = vmatpush1.xpose.msra.mxu0 0.0
        %848 = vmatprep.subr.mxu0 0.0
        %849 = vmatpush1.xpose.msra.mxu0 0.0
        %850 = vmatprep.subr.mxu0 0.0
        %851 = vmatpush1.xpose.msra.mxu0 0.0
        %852 = vmatprep.subr.mxu0 0.0
        %853 = vmatpush1.xpose.msra.mxu0 0.0
        %854 = vmatprep.subr.mxu0 0.0
        %855 = vmatpush1.xpose.msra.mxu0 0.0
        %856 = vmatprep.subr.mxu0 0.0
        %857 = vmatpush1.xpose.msra.mxu0 0.0
        %858 = vmatprep.subr.mxu0 0.0
        %859 = vmatpush1.xpose.msra.mxu0 0.0
        %860 = vmatprep.subr.mxu0 0.0
        %861 = vmatpush1.xpose.msra.mxu0 0.0
        %862 = vmatprep.subr.mxu0 0.0
        %863 = vmatpush1.xpose.msra.mxu0 0.0
        %864 = vmatprep.subr.mxu0 0.0
        %865 = vmatpush1.xpose.msra.mxu0 0.0
        %866 = vmatprep.subr.mxu0 0.0
        %867 = vmatpush1.xpose.msra.mxu0 0.0
        %868 = vmatprep.mubr.f32.mxu0 0.0
        %869 = vmatmul.mubr.f32.gmra.mrb[0].mxu0 %v800
        %v870 = vpop.f32.mrb[0].mxu0
        %v871 = vadd.f32 0.0, %v870
        %v872 = vpop.f32.mrb[0].mxu0
        %873 = vdwg.mxu0
        %v874 = vsel %vm711, %v871, -inf
        %875 = vmax.xlane.f32.xlu0 %v874
        %v876 = vpop.xlane.xlu0 %875
        %v877 = vsub.f32 %v871, %v876
        %v878 = vmul.f32 %v877, 1.442695
        %v879 = vpow.pop %v878
        %v880 = vsel %vm711, %v879, 0.0
        %881 = vadd.xlane.f32.xlu0 %v880
        %v882 = vpop.xlane.xlu0 %881
        %v883 = vrcp.pop %v882
        %v884 = vmul.f32 %v879, %v883
        %886 = vrot.lane.b32.xlu0 %v631, 112
        %v887 = vpop.permute.xlu0 %886
        %v890 = vsel %vm711, %v884, 0
        %892 = vmatprep.subr.mxu0 0.0
        %893 = vmatpush1.msra.mxu0 %v887
        %894 = vmatprep.subr.mxu0 0.0
        %895 = vmatpush1.msra.mxu0 0.0
        %896 = vmatprep.subr.mxu0 0.0
        %897 = vmatpush1.msra.mxu0 0.0
        %898 = vmatprep.subr.mxu0 0.0
        %899 = vmatpush1.msra.mxu0 0.0
        %900 = vmatprep.subr.mxu0 0.0
        %901 = vmatpush1.msra.mxu0 0.0
        %902 = vmatprep.subr.mxu0 0.0
        %903 = vmatpush1.msra.mxu0 0.0
        %904 = vmatprep.subr.mxu0 0.0
        %905 = vmatpush1.msra.mxu0 0.0
        %906 = vmatprep.subr.mxu0 0.0
        %907 = vmatpush1.msra.mxu0 0.0
        %908 = vmatprep.subr.mxu0 0.0
        %909 = vmatpush1.msra.mxu0 0.0
        %910 = vmatprep.subr.mxu0 0.0
        %911 = vmatpush1.msra.mxu0 0.0
        %912 = vmatprep.subr.mxu0 0.0
        %913 = vmatpush1.msra.mxu0 0.0
        %914 = vmatprep.subr.mxu0 0.0
        %915 = vmatpush1.msra.mxu0 0.0
        %916 = vmatprep.subr.mxu0 0.0
        %917 = vmatpush1.msra.mxu0 0.0
        %918 = vmatprep.subr.mxu0 0.0
        %919 = vmatpush1.msra.mxu0 0.0
        %920 = vmatprep.subr.mxu0 0.0
        %921 = vmatpush1.msra.mxu0 0.0
        %922 = vmatprep.subr.mxu0 0.0
        %923 = vmatpush1.msra.mxu0 0.0
        %924 = vmatprep.subr.mxu0 0.0
        %925 = vmatpush1.msra.mxu0 0.0
        %926 = vmatprep.subr.mxu0 0.0
        %927 = vmatpush1.msra.mxu0 0.0
        %928 = vmatprep.subr.mxu0 0.0
        %929 = vmatpush1.msra.mxu0 0.0
        %930 = vmatprep.subr.mxu0 0.0
        %931 = vmatpush1.msra.mxu0 0.0
        %932 = vmatprep.subr.mxu0 0.0
        %933 = vmatpush1.msra.mxu0 0.0
        %934 = vmatprep.subr.mxu0 0.0
        %935 = vmatpush1.msra.mxu0 0.0
        %936 = vmatprep.subr.mxu0 0.0
        %937 = vmatpush1.msra.mxu0 0.0
        %938 = vmatprep.subr.mxu0 0.0
        %939 = vmatpush1.msra.mxu0 0.0
        %940 = vmatprep.subr.mxu0 0.0
        %941 = vmatpush1.msra.mxu0 0.0
        %942 = vmatprep.subr.mxu0 0.0
        %943 = vmatpush1.msra.mxu0 0.0
        %944 = vmatprep.subr.mxu0 0.0
        %945 = vmatpush1.msra.mxu0 0.0
        %946 = vmatprep.subr.mxu0 0.0
        %947 = vmatpush1.msra.mxu0 0.0
        %948 = vmatprep.subr.mxu0 0.0
        %949 = vmatpush1.msra.mxu0 0.0
        %950 = vmatprep.subr.mxu0 0.0
        %951 = vmatpush1.msra.mxu0 0.0
        %952 = vmatprep.subr.mxu0 0.0
        %953 = vmatpush1.msra.mxu0 0.0
        %954 = vmatprep.subr.mxu0 0.0
        %955 = vmatpush1.msra.mxu0 0.0
        %956 = vmatprep.mubr.f32.mxu0 0.0
        %957 = vmatmul.mubr.f32.gmra.mrb[0].mxu0 %v890
        %v958 = vpop.f32.mrb[0].mxu0
        %v959 = vadd.f32 0.0, %v958
        %v960 = vpop.f32.mrb[0].mxu0
        %961 = vdwg.mxu0
        %963 = vrot.lane.b32.xlu0 %v959, 16
        %v964 = vpop.permute.xlu0 %963
        %v966 = vsel %vm634, %v793, %v964
        %967 = vst.msk [vmem:[%s398] sm:$0xff] %vm406, %v966
        %s968 = sand.u32 %s193, 1
        %s969 = scalar_lea.sflag [#allocation4], %s968
        %s970 = sand.u32 %s193, 1
        %s971 = smul.addr %s970, 8
        %s972 = scalar_lea.vmem [#allocation13], %s971
        // Predicated region
        $region69: #{tpu_custom_call.1} parent=43 // pred_check
          %p973 = pneg %p203
        $region70: #{tpu_custom_call.1} parent=43 // pred_check_branch
          %975 = sbr.rel (%p973) target = $region72
        $region71: #{tpu_custom_call.1} parent=43 // pred_region
          %s977 = ssub.s32 128, 128
          %978 = vsyncadd %s969, %s977
          %s979 = sadd.s32 %s33, %s32
          %s980 = smul.addr %s979, 128
          %s981 = scalar_lea.hbm %s6, %s980
          %s983 = sshll.u32 %s972, 4
          %s984 = int_to_ptr.vmem [resolvable:$true] %s983
          %986 = dma.vmem_to_hbm [thread:$0]  %s984, 128, %s981, %s969
        $region72: #{tpu_custom_call.1} parent=43 // pred_fallthru
          _
      $region44: #{tpu_custom_call.1} parent=5 // pred_fallthru
        _
      %p987 = scmp.le.s32.totalorder 2, %s23
      // Predicated region
      $region73: #{tpu_custom_call.1} parent=5 // pred_check
        %p988 = pneg %p987
      $region74: #{tpu_custom_call.1} parent=5 // pred_check_branch
        %990 = sbr.rel (%p988) target = $region76
      $region75: #{tpu_custom_call.1} parent=5 // pred_region
        %s991 = ssub.s32 %s23, 2
        // Predicated region
        $region77: #{tpu_custom_call.1} parent=75 // pred_check
          %p992 = pneg %p209
        $region78: #{tpu_custom_call.1} parent=75 // pred_check_branch
          %994 = sbr.rel (%p992) target = $region80
        $region79: #{tpu_custom_call.1} parent=75 // pred_region
          %s995 = sand.u32 %s194, 1
          %s996 = scalar_lea.sflag [#allocation4], %s995
          %s997 = sand.u32 %s194, 1
          %s998 = smul.addr %s997, 8
          %s999 = scalar_lea.vmem [#allocation13], %s998
          %1000 = dma.done %s996, 128
        $region80: #{tpu_custom_call.1} parent=75 // pred_fallthru
          _
      $region76: #{tpu_custom_call.1} parent=5 // pred_fallthru
        _
    $region6: #{tpu_custom_call.1} parent=1 // loop_footer
      %s27 = sadd.s32 1, %s23
    $region7: #{tpu_custom_call.1} parent=1 // loop_footer_branch
      %22 = sbr.rel target = $region3
    $region8: #{tpu_custom_call.1} parent=1 // loop_exit
      _
    %1001 = vsyncpa [#allocation3], 1
    %s1002 = scalar_lea.sflag [#allocation3], 1
    %1003 = vsyncpa %s1002, 1
    %1004 = vsyncpa [#allocation6], 1
    %s1005 = scalar_lea.sflag [#allocation6], 1
    %1006 = vsyncpa %s1005, 1
    %1007 = vsyncpa [#allocation9], 1
    %1008 = vsyncpa [#allocation12], 1
    %1009 = vsyncpa [#allocation4], 1
    %s1010 = scalar_lea.sflag [#allocation4], 1
    %1011 = vsyncpa %s1010, 1

</llo_original>
